<compile_context>
chip_gen: v5e
topology: v5e:2x2
jax: 0.10.0
libtpu: 0.0.40
codegen_flags: <defaults>
</compile_context>

<pallas_src>
import functools

import jax
import jax.numpy as jnp
from jax import lax
from jax.experimental import pallas as pl
from jax.experimental.pallas import tpu as pltpu


# ----------------------------- fused Pallas kernel --------------------------


def _fused_kernel(x_ref,                         # (1, Cin, HW)
                  pts_ref,                       # (1, P, 2) (x, y) pixel coords
                  masks_ref,                     # (9, HW)  0/1 border masks
                  coords_ref,                    # (2, HW)  row0=x(col), row1=y(row)
                  w1_ref, b1_ref,                # (Cmid, 9*Cin), (Cmid, 1)
                  w2_ref, b2_ref,                # (Cmid, 9*Cmid), (Cmid, 1)
                  w3_ref, b3_ref,                # (1, Cmid), (1, 1)
                  o_ref,                         # (1, 1, HW)
                  *, H, W, sigma):
    HW = H * W
    masks = masks_ref[...]                       # (9, HW), loaded once

    def conv3x3_relu(x, w_mat, b_col):
        # x: (C, HW) lane-dense; w_mat: (Cout, 9*C); b_col: (Cout, 1).
        # 'same' zero padding is realised as circular lane shifts masked by
        # precomputed border masks -> one im2col matmul on the MXU.
        taps = []
        t = 0
        for dy in (-1, 0, 1):                    # kernel row (kh - 1)
            for dx in (-1, 0, 1):                # kernel col (kw - 1)
                s = dy * W + dx                  # flattened shift
                if s == 0:
                    shifted = x
                else:
                    shifted = pltpu.roll(x, shift=(-s) % HW, axis=1)
                taps.append(shifted * masks[t:t + 1, :])
                t += 1
        patches = jnp.concatenate(taps, axis=0)                  # (9*C, HW)
        y = jnp.dot(w_mat, patches, preferred_element_type=jnp.float32)
        return jnp.maximum(y + b_col, 0.0)                        # (Cout, HW)

    # ---- backbone: two 3x3 conv + ReLU, intermediates stay in VMEM ----
    x = x_ref[0].astype(jnp.float32)                              # (Cin, HW)
    f1 = conv3x3_relu(x, w1_ref[...], b1_ref[...])                # (Cmid, HW)
    f2 = conv3x3_relu(f1, w2_ref[...], b2_ref[...])               # (Cmid, HW)

    # ---- decoder: prompt-point gaussian heat map, vectorised over points ----
    pts = pts_ref[0].astype(jnp.float32)                          # (P, 2)
    px = pts[:, 0:1]                                              # (P, 1)
    py = pts[:, 1:2]                                              # (P, 1)
    xx = coords_ref[0:1, :]                                       # (1, HW)
    yy = coords_ref[1:2, :]                                       # (1, HW)
    inv = 1.0 / (2.0 * sigma * sigma)
    d2 = (xx - px) ** 2 + (yy - py) ** 2                          # (P, HW)
    heat = jnp.max(jnp.exp(-d2 * inv), axis=0, keepdims=True)     # (1, HW)

    # prompt conditioning (uniform additive bias over channels) + 1x1 head
    feat = f2 + heat                                              # (Cmid, HW)
    logits = jnp.dot(w3_ref[...], feat,
                     preferred_element_type=jnp.float32) + b3_ref[...]
    o_ref[0] = jax.nn.sigmoid(logits).astype(o_ref.dtype)         # (1, HW)


def _conv_consts(H, W):
    """Border masks (9, HW) for the 9 conv taps and pixel coords (2, HW)."""
    hh = jnp.arange(H, dtype=jnp.int32).reshape(H, 1)
    ww = jnp.arange(W, dtype=jnp.int32).reshape(1, W)
    masks = []
    for dy in (-1, 0, 1):
        for dx in (-1, 0, 1):
            valid = ((hh + dy >= 0) & (hh + dy < H) &
                     (ww + dx >= 0) & (ww + dx < W))               # (H, W)
            masks.append(valid.reshape(1, H * W))
    masks = jnp.concatenate(masks, axis=0).astype(jnp.float32)     # (9, HW)
    coords = jnp.stack(
        [jnp.broadcast_to(ww, (H, W)).reshape(-1),                 # x (col)
         jnp.broadcast_to(hh, (H, W)).reshape(-1)],                # y (row)
        axis=0).astype(jnp.float32)                                # (2, HW)
    return masks, coords


def fused_forward(x, pts, w1, b1, w2, b2, w3, b3, *, sigma=2.0):
    """x: (N, Cin, H, W) NCHW; pts: (N, P, 2) (x, y) pixel coords.

    Returns (N, 1, H, W) probabilities."""
    N, Cin, H, W = x.shape
    Cmid = w1.shape[0]
    P = pts.shape[1]
    HW = H * W
    x_flat = x.astype(jnp.float32).reshape(N, Cin, HW)   # contiguous -> free
    pts_f = pts.astype(jnp.float32)
    masks, coords = _conv_consts(H, W)

    kernel = functools.partial(_fused_kernel, H=H, W=W, sigma=sigma)
    out = pl.pallas_call(
        kernel,
        out_shape=jax.ShapeDtypeStruct((N, 1, HW), jnp.float32),
        grid_spec=pltpu.PrefetchScalarGridSpec(
            num_scalar_prefetch=0,
            grid=(N,),
            in_specs=[
                pl.BlockSpec((1, Cin, HW), lambda n: (n, 0, 0)),
                pl.BlockSpec((1, P, 2), lambda n: (n, 0, 0)),
                pl.BlockSpec((9, HW), lambda n: (0, 0)),
                pl.BlockSpec((2, HW), lambda n: (0, 0)),
                pl.BlockSpec((Cmid, 9 * Cin), lambda n: (0, 0)),
                pl.BlockSpec((Cmid, 1), lambda n: (0, 0)),
                pl.BlockSpec((Cmid, 9 * Cmid), lambda n: (0, 0)),
                pl.BlockSpec((Cmid, 1), lambda n: (0, 0)),
                pl.BlockSpec((1, Cmid), lambda n: (0, 0)),
                pl.BlockSpec((1, 1), lambda n: (0, 0)),
            ],
            out_specs=pl.BlockSpec((1, 1, HW), lambda n: (n, 0, 0)),
        ),
        compiler_params=pltpu.CompilerParams(
            dimension_semantics=("parallel",)),
    )(x_flat, pts_f, masks, coords, w1, b1, w2, b2, w3, b3)
    return out.reshape(N, 1, H, W)


# ------------------------------- model wrapper -------------------------------


class SegDetectorModel:
    """JAX/Pallas reimplementation of the PyTorch SegDetectorModel forward."""

    def __init__(self, key, in_channels=4, mid_channels=8, sigma=2.0):
        k1, k2, k3, k4, k5 = jax.random.split(key, 5)
        s = 0.1
        self.sigma = float(sigma)
        # HWIO weights (kept for the pure-JAX reference check).
        self.w1_hwio = s * jax.random.normal(
            k1, (3, 3, in_channels, mid_channels), jnp.float32)
        self.w2_hwio = s * jax.random.normal(
            k2, (3, 3, mid_channels, mid_channels), jnp.float32)
        # HWIO -> (Cout, kh*kw*Cin) to match the kernel's im2col ordering.
        self.w1 = jnp.transpose(self.w1_hwio, (3, 0, 1, 2)).reshape(
            mid_channels, 9 * in_channels)
        self.w2 = jnp.transpose(self.w2_hwio, (3, 0, 1, 2)).reshape(
            mid_channels, 9 * mid_channels)
        self.b1 = s * jax.random.normal(k4, (mid_channels, 1), jnp.float32)
        self.b2 = s * jax.random.normal(k5, (mid_channels, 1), jnp.float32)
        self.w3 = s * jax.random.normal(k3, (1, mid_channels), jnp.float32)
        self.b3 = jnp.zeros((1, 1), jnp.float32)

    def __call__(self, batch, epoch=0, training=False):
        if isinstance(batch, dict):
            data = batch["image"]
            prompt_points = batch.get("center_points", None)
        else:
            data = batch
            prompt_points = None

        data = data.astype(jnp.float32)          # data = data.float()
        N = data.shape[0]
        if prompt_points is None:
            # No prompt: a single far-away point -> heat map identically 0.
            prompt_points = jnp.full((N, 1, 2), -1e4, jnp.float32)

        # TODO(synk): training branch needs SegDetectorLossBuilder (loss class
        # not provided in source); only the eval path `return pred` is modeled.
        return fused_forward(data, prompt_points,
                             self.w1, self.b1, self.w2, self.b2,
                             self.w3, self.b3, sigma=self.sigma)


# ------------------------------ pure-JAX reference ---------------------------


def reference_forward(model, data, pts):
    f = lax.conv_general_dilated(
        data, model.w1_hwio, (1, 1), "SAME",
        dimension_numbers=("NCHW", "HWIO", "NCHW"))
    f = jnp.maximum(f + model.b1.reshape(1, -1, 1, 1), 0.0)
    f = lax.conv_general_dilated(
        f, model.w2_hwio, (1, 1), "SAME",
        dimension_numbers=("NCHW", "HWIO", "NCHW"))
    f = jnp.maximum(f + model.b2.reshape(1, -1, 1, 1), 0.0)
    N, _, H, W = f.shape
    yy = jnp.arange(H, dtype=jnp.float32).reshape(1, 1, H, 1)
    xx = jnp.arange(W, dtype=jnp.float32).reshape(1, 1, 1, W)
    heat = jnp.zeros((N, 1, H, W), jnp.float32)
    for p in range(pts.shape[1]):
        px = pts[:, p, 0].reshape(N, 1, 1, 1)
        py = pts[:, p, 1].reshape(N, 1, 1, 1)
        d2 = (xx - px) ** 2 + (yy - py) ** 2
        heat = jnp.maximum(heat, jnp.exp(-d2 / (2.0 * model.sigma ** 2)))
    feat = f + heat
    logits = jnp.einsum("oc,nchw->nohw", model.w3, feat) + model.b3.reshape(
        1, 1, 1, 1)
    return jax.nn.sigmoid(logits)


# ------------------------------------ main -----------------------------------

if __name__ == "__main__":
    key = jax.random.PRNGKey(0)
    k_img, k_pts, k_params = jax.random.split(key, 3)

    N, C, H, W, P = 2, 4, 16, 16, 3
    image = jax.random.normal(k_img, (N, C, H, W), jnp.float32)
    center_points = jax.random.randint(k_pts, (N, P, 2), 0, H).astype(
        jnp.float32)
    batch = {"image": image, "center_points": center_points}

    model = SegDetectorModel(k_params, in_channels=C, mid_channels=8)
    pred = model(batch, epoch=0, training=False)
    pred = jax.block_until_ready(pred)

    assert pred.shape == (N, 1, H, W)
    assert bool(jnp.all(jnp.isfinite(pred)))
    assert bool(jnp.all((pred >= 0.0) & (pred <= 1.0)))

    ref = reference_forward(model, image.astype(jnp.float32), center_points)
    max_err = float(jnp.max(jnp.abs(pred - ref)))
    assert max_err < 5e-2, f"kernel vs reference mismatch: {max_err}"
    print("KERNEL_OK")
</pallas_src>

<mosaic_0001>
module attributes {stable_mosaic.version = 11 : i64} {
  func.func @_fused_kernel(%arg0: i32, %arg1: memref<1x4x256xf32, #tpu.memory_space<vmem>>, %arg2: memref<1x3x2xf32, #tpu.memory_space<vmem>>, %arg3: memref<9x256xf32, #tpu.memory_space<vmem>>, %arg4: memref<2x256xf32, #tpu.memory_space<vmem>>, %arg5: memref<8x36xf32, #tpu.memory_space<vmem>>, %arg6: memref<8x1xf32, #tpu.memory_space<vmem>>, %arg7: memref<8x72xf32, #tpu.memory_space<vmem>>, %arg8: memref<8x1xf32, #tpu.memory_space<vmem>>, %arg9: memref<1x8xf32, #tpu.memory_space<vmem>>, %arg10: memref<1x1xf32, #tpu.memory_space<vmem>>, %arg11: memref<1x1x256xf32, #tpu.memory_space<vmem>>) attributes {dimension_semantics = [#tpu.dimension_semantics<parallel>], iteration_bounds = array<i64: 2>, scalar_prefetch = 0 : i64, scratch_operands = 0 : i64, tpu.core_type = #tpu.core_type<tc>, window_params = [{transform_indices = @transform_0, window_bounds = array<i64: 1, 4, 256>}, {transform_indices = @transform_1, window_bounds = array<i64: 1, 3, 2>}, {pipeline_mode = #tpu.pipeline_mode<synchronous>, transform_indices = @transform_2, window_bounds = array<i64: 9, 256>}, {pipeline_mode = #tpu.pipeline_mode<synchronous>, transform_indices = @transform_3, window_bounds = array<i64: 2, 256>}, {pipeline_mode = #tpu.pipeline_mode<synchronous>, transform_indices = @transform_4, window_bounds = array<i64: 8, 36>}, {pipeline_mode = #tpu.pipeline_mode<synchronous>, transform_indices = @transform_5, window_bounds = array<i64: 8, 1>}, {pipeline_mode = #tpu.pipeline_mode<synchronous>, transform_indices = @transform_6, window_bounds = array<i64: 8, 72>}, {pipeline_mode = #tpu.pipeline_mode<synchronous>, transform_indices = @transform_7, window_bounds = array<i64: 8, 1>}, {pipeline_mode = #tpu.pipeline_mode<synchronous>, transform_indices = @transform_8, window_bounds = array<i64: 1, 8>}, {pipeline_mode = #tpu.pipeline_mode<synchronous>, transform_indices = @transform_9, window_bounds = array<i64: 1, 1>}, {transform_indices = @transform_10, window_bounds = array<i64: 1, 1, 256>}]} {
    %c0 = arith.constant 0 : index
    %c0_0 = arith.constant 0 : index
    %0 = vector.load %arg3[%c0, %c0_0] : memref<9x256xf32, #tpu.memory_space<vmem>>, vector<9x256xf32>
    %c0_1 = arith.constant 0 : index
    %c0_2 = arith.constant 0 : index
    %c0_3 = arith.constant 0 : index
    %1 = vector.load %arg1[%c0_1, %c0_2, %c0_3] : memref<1x4x256xf32, #tpu.memory_space<vmem>>, vector<1x4x256xf32>
    %2 = vector.shape_cast %1 : vector<1x4x256xf32> to vector<4x256xf32>
    %c0_4 = arith.constant 0 : index
    %c0_5 = arith.constant 0 : index
    %3 = vector.load %arg5[%c0_4, %c0_5] : memref<8x36xf32, #tpu.memory_space<vmem>>, vector<8x36xf32>
    %c0_6 = arith.constant 0 : index
    %c0_7 = arith.constant 0 : index
    %4 = vector.load %arg6[%c0_6, %c0_7] : memref<8x1xf32, #tpu.memory_space<vmem>>, vector<8x1xf32>
    %c17_i32 = arith.constant 17 : i32
    %5 = tpu.dynamic_rotate %2 by %c17_i32 dim 1 : vector<4x256xf32>, i32 -> vector<4x256xf32>
    %6 = vector.extract_strided_slice %0 {offsets = [0, 0], sizes = [1, 256], strides = [1, 1]} : vector<9x256xf32> to vector<1x256xf32>
    %7 = vector.broadcast %6 : vector<1x256xf32> to vector<4x256xf32>
    %8 = arith.mulf %5, %7 : vector<4x256xf32>
    %c16_i32 = arith.constant 16 : i32
    %9 = tpu.dynamic_rotate %2 by %c16_i32 dim 1 : vector<4x256xf32>, i32 -> vector<4x256xf32>
    %10 = vector.extract_strided_slice %0 {offsets = [1, 0], sizes = [1, 256], strides = [1, 1]} : vector<9x256xf32> to vector<1x256xf32>
    %11 = vector.broadcast %10 : vector<1x256xf32> to vector<4x256xf32>
    %12 = arith.mulf %9, %11 : vector<4x256xf32>
    %c15_i32 = arith.constant 15 : i32
    %13 = tpu.dynamic_rotate %2 by %c15_i32 dim 1 : vector<4x256xf32>, i32 -> vector<4x256xf32>
    %14 = vector.extract_strided_slice %0 {offsets = [2, 0], sizes = [1, 256], strides = [1, 1]} : vector<9x256xf32> to vector<1x256xf32>
    %15 = vector.broadcast %14 : vector<1x256xf32> to vector<4x256xf32>
    %16 = arith.mulf %13, %15 : vector<4x256xf32>
    %c1_i32 = arith.constant 1 : i32
    %17 = tpu.dynamic_rotate %2 by %c1_i32 dim 1 : vector<4x256xf32>, i32 -> vector<4x256xf32>
    %18 = vector.extract_strided_slice %0 {offsets = [3, 0], sizes = [1, 256], strides = [1, 1]} : vector<9x256xf32> to vector<1x256xf32>
    %19 = vector.broadcast %18 : vector<1x256xf32> to vector<4x256xf32>
    %20 = arith.mulf %17, %19 : vector<4x256xf32>
    %21 = vector.extract_strided_slice %0 {offsets = [4, 0], sizes = [1, 256], strides = [1, 1]} : vector<9x256xf32> to vector<1x256xf32>
    %22 = vector.broadcast %21 : vector<1x256xf32> to vector<4x256xf32>
    %23 = arith.mulf %2, %22 : vector<4x256xf32>
    %c255_i32 = arith.constant 255 : i32
    %24 = tpu.dynamic_rotate %2 by %c255_i32 dim 1 : vector<4x256xf32>, i32 -> vector<4x256xf32>
    %25 = vector.extract_strided_slice %0 {offsets = [5, 0], sizes = [1, 256], strides = [1, 1]} : vector<9x256xf32> to vector<1x256xf32>
    %26 = vector.broadcast %25 : vector<1x256xf32> to vector<4x256xf32>
    %27 = arith.mulf %24, %26 : vector<4x256xf32>
    %c241_i32 = arith.constant 241 : i32
    %28 = tpu.dynamic_rotate %2 by %c241_i32 dim 1 : vector<4x256xf32>, i32 -> vector<4x256xf32>
    %29 = vector.extract_strided_slice %0 {offsets = [6, 0], sizes = [1, 256], strides = [1, 1]} : vector<9x256xf32> to vector<1x256xf32>
    %30 = vector.broadcast %29 : vector<1x256xf32> to vector<4x256xf32>
    %31 = arith.mulf %28, %30 : vector<4x256xf32>
    %c240_i32 = arith.constant 240 : i32
    %32 = tpu.dynamic_rotate %2 by %c240_i32 dim 1 : vector<4x256xf32>, i32 -> vector<4x256xf32>
    %33 = vector.extract_strided_slice %0 {offsets = [7, 0], sizes = [1, 256], strides = [1, 1]} : vector<9x256xf32> to vector<1x256xf32>
    %34 = vector.broadcast %33 : vector<1x256xf32> to vector<4x256xf32>
    %35 = arith.mulf %32, %34 : vector<4x256xf32>
    %c239_i32 = arith.constant 239 : i32
    %36 = tpu.dynamic_rotate %2 by %c239_i32 dim 1 : vector<4x256xf32>, i32 -> vector<4x256xf32>
    %37 = vector.extract_strided_slice %0 {offsets = [8, 0], sizes = [1, 256], strides = [1, 1]} : vector<9x256xf32> to vector<1x256xf32>
    %38 = vector.broadcast %37 : vector<1x256xf32> to vector<4x256xf32>
    %39 = arith.mulf %36, %38 : vector<4x256xf32>
    %40 = tpu.concatenate %8, %12, %16, %20, %23, %27, %31, %35, %39 in 0 : vector<4x256xf32>, vector<4x256xf32>, vector<4x256xf32>, vector<4x256xf32>, vector<4x256xf32>, vector<4x256xf32>, vector<4x256xf32>, vector<4x256xf32>, vector<4x256xf32> -> vector<36x256xf32>
    %cst = arith.constant dense<0.000000e+00> : vector<8x256xf32>
    %41 = tpu.matmul %3, %40, %cst {dimension_numbers = #tpu.dot_dimension_numbers<[1], [0], [0], [1], [0, 0, 1, 1], [], []>} : vector<8x36xf32>, vector<36x256xf32>, vector<8x256xf32> -> vector<8x256xf32>
    %42 = vector.broadcast %4 : vector<8x1xf32> to vector<8x256xf32>
    %43 = arith.addf %41, %42 : vector<8x256xf32>
    %cst_8 = arith.constant 0.000000e+00 : f32
    %44 = vector.broadcast %cst_8 : f32 to vector<8x256xf32>
    %45 = arith.maximumf %43, %44 : vector<8x256xf32>
    %c0_9 = arith.constant 0 : index
    %c0_10 = arith.constant 0 : index
    %46 = vector.load %arg7[%c0_9, %c0_10] : memref<8x72xf32, #tpu.memory_space<vmem>>, vector<8x72xf32>
    %c0_11 = arith.constant 0 : index
    %c0_12 = arith.constant 0 : index
    %47 = vector.load %arg8[%c0_11, %c0_12] : memref<8x1xf32, #tpu.memory_space<vmem>>, vector<8x1xf32>
    %c17_i32_13 = arith.constant 17 : i32
    %48 = tpu.dynamic_rotate %45 by %c17_i32_13 dim 1 : vector<8x256xf32>, i32 -> vector<8x256xf32>
    %49 = vector.extract_strided_slice %0 {offsets = [0, 0], sizes = [1, 256], strides = [1, 1]} : vector<9x256xf32> to vector<1x256xf32>
    %50 = vector.broadcast %49 : vector<1x256xf32> to vector<8x256xf32>
    %51 = arith.mulf %48, %50 : vector<8x256xf32>
    %c16_i32_14 = arith.constant 16 : i32
    %52 = tpu.dynamic_rotate %45 by %c16_i32_14 dim 1 : vector<8x256xf32>, i32 -> vector<8x256xf32>
    %53 = vector.extract_strided_slice %0 {offsets = [1, 0], sizes = [1, 256], strides = [1, 1]} : vector<9x256xf32> to vector<1x256xf32>
    %54 = vector.broadcast %53 : vector<1x256xf32> to vector<8x256xf32>
    %55 = arith.mulf %52, %54 : vector<8x256xf32>
    %c15_i32_15 = arith.constant 15 : i32
    %56 = tpu.dynamic_rotate %45 by %c15_i32_15 dim 1 : vector<8x256xf32>, i32 -> vector<8x256xf32>
    %57 = vector.extract_strided_slice %0 {offsets = [2, 0], sizes = [1, 256], strides = [1, 1]} : vector<9x256xf32> to vector<1x256xf32>
    %58 = vector.broadcast %57 : vector<1x256xf32> to vector<8x256xf32>
    %59 = arith.mulf %56, %58 : vector<8x256xf32>
    %c1_i32_16 = arith.constant 1 : i32
    %60 = tpu.dynamic_rotate %45 by %c1_i32_16 dim 1 : vector<8x256xf32>, i32 -> vector<8x256xf32>
    %61 = vector.extract_strided_slice %0 {offsets = [3, 0], sizes = [1, 256], strides = [1, 1]} : vector<9x256xf32> to vector<1x256xf32>
    %62 = vector.broadcast %61 : vector<1x256xf32> to vector<8x256xf32>
    %63 = arith.mulf %60, %62 : vector<8x256xf32>
    %64 = vector.extract_strided_slice %0 {offsets = [4, 0], sizes = [1, 256], strides = [1, 1]} : vector<9x256xf32> to vector<1x256xf32>
    %65 = vector.broadcast %64 : vector<1x256xf32> to vector<8x256xf32>
    %66 = arith.mulf %45, %65 : vector<8x256xf32>
    %c255_i32_17 = arith.constant 255 : i32
    %67 = tpu.dynamic_rotate %45 by %c255_i32_17 dim 1 : vector<8x256xf32>, i32 -> vector<8x256xf32>
    %68 = vector.extract_strided_slice %0 {offsets = [5, 0], sizes = [1, 256], strides = [1, 1]} : vector<9x256xf32> to vector<1x256xf32>
    %69 = vector.broadcast %68 : vector<1x256xf32> to vector<8x256xf32>
    %70 = arith.mulf %67, %69 : vector<8x256xf32>
    %c241_i32_18 = arith.constant 241 : i32
    %71 = tpu.dynamic_rotate %45 by %c241_i32_18 dim 1 : vector<8x256xf32>, i32 -> vector<8x256xf32>
    %72 = vector.extract_strided_slice %0 {offsets = [6, 0], sizes = [1, 256], strides = [1, 1]} : vector<9x256xf32> to vector<1x256xf32>
    %73 = vector.broadcast %72 : vector<1x256xf32> to vector<8x256xf32>
    %74 = arith.mulf %71, %73 : vector<8x256xf32>
    %c240_i32_19 = arith.constant 240 : i32
    %75 = tpu.dynamic_rotate %45 by %c240_i32_19 dim 1 : vector<8x256xf32>, i32 -> vector<8x256xf32>
    %76 = vector.extract_strided_slice %0 {offsets = [7, 0], sizes = [1, 256], strides = [1, 1]} : vector<9x256xf32> to vector<1x256xf32>
    %77 = vector.broadcast %76 : vector<1x256xf32> to vector<8x256xf32>
    %78 = arith.mulf %75, %77 : vector<8x256xf32>
    %c239_i32_20 = arith.constant 239 : i32
    %79 = tpu.dynamic_rotate %45 by %c239_i32_20 dim 1 : vector<8x256xf32>, i32 -> vector<8x256xf32>
    %80 = vector.extract_strided_slice %0 {offsets = [8, 0], sizes = [1, 256], strides = [1, 1]} : vector<9x256xf32> to vector<1x256xf32>
    %81 = vector.broadcast %80 : vector<1x256xf32> to vector<8x256xf32>
    %82 = arith.mulf %79, %81 : vector<8x256xf32>
    %83 = tpu.concatenate %51, %55, %59, %63, %66, %70, %74, %78, %82 in 0 : vector<8x256xf32>, vector<8x256xf32>, vector<8x256xf32>, vector<8x256xf32>, vector<8x256xf32>, vector<8x256xf32>, vector<8x256xf32>, vector<8x256xf32>, vector<8x256xf32> -> vector<72x256xf32>
    %cst_21 = arith.constant dense<0.000000e+00> : vector<8x256xf32>
    %84 = tpu.matmul %46, %83, %cst_21 {dimension_numbers = #tpu.dot_dimension_numbers<[1], [0], [0], [1], [0, 0, 1, 1], [], []>} : vector<8x72xf32>, vector<72x256xf32>, vector<8x256xf32> -> vector<8x256xf32>
    %85 = vector.broadcast %47 : vector<8x1xf32> to vector<8x256xf32>
    %86 = arith.addf %84, %85 : vector<8x256xf32>
    %cst_22 = arith.constant 0.000000e+00 : f32
    %87 = vector.broadcast %cst_22 : f32 to vector<8x256xf32>
    %88 = arith.maximumf %86, %87 : vector<8x256xf32>
    %c0_23 = arith.constant 0 : index
    %c0_24 = arith.constant 0 : index
    %c0_25 = arith.constant 0 : index
    %89 = vector.load %arg2[%c0_23, %c0_24, %c0_25] : memref<1x3x2xf32, #tpu.memory_space<vmem>>, vector<1x3x2xf32>
    %90 = vector.shape_cast %89 : vector<1x3x2xf32> to vector<3x2xf32>
    %91 = vector.extract_strided_slice %90 {offsets = [0, 0], sizes = [3, 1], strides = [1, 1]} : vector<3x2xf32> to vector<3x1xf32>
    %92 = vector.extract_strided_slice %90 {offsets = [0, 1], sizes = [3, 1], strides = [1, 1]} : vector<3x2xf32> to vector<3x1xf32>
    %c0_26 = arith.constant 0 : index
    %c0_27 = arith.constant 0 : index
    %93 = vector.load %arg4[%c0_26, %c0_27] : memref<2x256xf32, #tpu.memory_space<vmem>>, vector<1x256xf32>
    %c1 = arith.constant 1 : index
    %c0_28 = arith.constant 0 : index
    %94 = vector.load %arg4[%c1, %c0_28] : memref<2x256xf32, #tpu.memory_space<vmem>>, vector<1x256xf32>
    %95 = vector.broadcast %93 : vector<1x256xf32> to vector<3x256xf32>
    %96 = vector.broadcast %91 : vector<3x1xf32> to vector<3x256xf32>
    %97 = arith.subf %95, %96 : vector<3x256xf32>
    %98 = arith.mulf %97, %97 : vector<3x256xf32>
    %99 = vector.broadcast %94 : vector<1x256xf32> to vector<3x256xf32>
    %100 = vector.broadcast %92 : vector<3x1xf32> to vector<3x256xf32>
    %101 = arith.subf %99, %100 : vector<3x256xf32>
    %102 = arith.mulf %101, %101 : vector<3x256xf32>
    %103 = arith.addf %98, %102 : vector<3x256xf32>
    %cst_29 = arith.constant 0.000000e+00 : f32
    %104 = vector.broadcast %cst_29 : f32 to vector<3x256xf32>
    %105 = arith.subf %104, %103 : vector<3x256xf32>
    %cst_30 = arith.constant 1.250000e-01 : f32
    %106 = vector.broadcast %cst_30 : f32 to vector<3x256xf32>
    %107 = arith.mulf %105, %106 : vector<3x256xf32>
    %108 = math.exp %107 : vector<3x256xf32>
    %cst_31 = arith.constant dense<0xFF800000> : vector<256xf32>
    %109 = vector.multi_reduction <maximumf>, %108, %cst_31 [0] : vector<3x256xf32> to vector<256xf32>
    %110 = vector.shape_cast %109 : vector<256xf32> to vector<1x256xf32>
    %111 = vector.broadcast %110 : vector<1x256xf32> to vector<8x256xf32>
    %112 = arith.addf %88, %111 : vector<8x256xf32>
    %c0_32 = arith.constant 0 : index
    %c0_33 = arith.constant 0 : index
    %113 = vector.load %arg9[%c0_32, %c0_33] : memref<1x8xf32, #tpu.memory_space<vmem>>, vector<1x8xf32>
    %cst_34 = arith.constant dense<0.000000e+00> : vector<1x256xf32>
    %114 = tpu.matmul %113, %112, %cst_34 {dimension_numbers = #tpu.dot_dimension_numbers<[1], [0], [0], [1], [0, 0, 1, 1], [], []>} : vector<1x8xf32>, vector<8x256xf32>, vector<1x256xf32> -> vector<1x256xf32>
    %c0_35 = arith.constant 0 : index
    %c0_36 = arith.constant 0 : index
    %115 = vector.load %arg10[%c0_35, %c0_36] : memref<1x1xf32, #tpu.memory_space<vmem>>, vector<1x1xf32>
    %116 = vector.broadcast %115 : vector<1x1xf32> to vector<1x256xf32>
    %117 = arith.addf %114, %116 : vector<1x256xf32>
    %118 = arith.negf %117 : vector<1x256xf32>
    %119 = math.exp %118 : vector<1x256xf32>
    %cst_37 = arith.constant 1.000000e+00 : f32
    %120 = vector.broadcast %cst_37 : f32 to vector<1x256xf32>
    %121 = arith.addf %120, %119 : vector<1x256xf32>
    %122 = arith.divf %120, %121 : vector<1x256xf32>
    %c0_38 = arith.constant 0 : index
    %c0_39 = arith.constant 0 : index
    %c0_40 = arith.constant 0 : index
    %123 = vector.load %arg11[%c0_38, %c0_39, %c0_40] : memref<1x1x256xf32, #tpu.memory_space<vmem>>, vector<1x1x256xf32>
    %124 = vector.shape_cast %123 : vector<1x1x256xf32> to vector<1x256xf32>
    %125 = vector.shape_cast %122 : vector<1x256xf32> to vector<1x1x256xf32>
    tpu.vector_store %arg11[%c0_38, %c0_39, %c0_40], %125 {strides = array<i32>} : memref<1x1x256xf32, #tpu.memory_space<vmem>>, vector<1x1x256xf32>,
    return
  }
  func.func @transform_0(%arg0: i32) -> (i32, i32, i32) {
    %c0_i32 = arith.constant 0 : i32
    %c0_i32_0 = arith.constant 0 : i32
    %c0_i32_1 = arith.constant 0 : i32
    return %arg0, %c0_i32, %c0_i32_0 : i32, i32, i32
  }
  func.func @transform_1(%arg0: i32) -> (i32, i32, i32) {
    %c0_i32 = arith.constant 0 : i32
    %c0_i32_0 = arith.constant 0 : i32
    %c0_i32_1 = arith.constant 0 : i32
    return %arg0, %c0_i32, %c0_i32_0 : i32, i32, i32
  }
  func.func @transform_2(%arg0: i32) -> (i32, i32) {
    %c0_i32 = arith.constant 0 : i32
    %c0_i32_0 = arith.constant 0 : i32
    %c0_i32_1 = arith.constant 0 : i32
    return %c0_i32, %c0_i32_0 : i32, i32
  }
  func.func @transform_3(%arg0: i32) -> (i32, i32) {
    %c0_i32 = arith.constant 0 : i32
    %c0_i32_0 = arith.constant 0 : i32
    %c0_i32_1 = arith.constant 0 : i32
    return %c0_i32, %c0_i32_0 : i32, i32
  }
  func.func @transform_4(%arg0: i32) -> (i32, i32) {
    %c0_i32 = arith.constant 0 : i32
    %c0_i32_0 = arith.constant 0 : i32
    %c0_i32_1 = arith.constant 0 : i32
    return %c0_i32, %c0_i32_0 : i32, i32
  }
  func.func @transform_5(%arg0: i32) -> (i32, i32) {
    %c0_i32 = arith.constant 0 : i32
    %c0_i32_0 = arith.constant 0 : i32
    %c0_i32_1 = arith.constant 0 : i32
    return %c0_i32, %c0_i32_0 : i32, i32
  }
  func.func @transform_6(%arg0: i32) -> (i32, i32) {
    %c0_i32 = arith.constant 0 : i32
    %c0_i32_0 = arith.constant 0 : i32
    %c0_i32_1 = arith.constant 0 : i32
    return %c0_i32, %c0_i32_0 : i32, i32
  }
  func.func @transform_7(%arg0: i32) -> (i32, i32) {
    %c0_i32 = arith.constant 0 : i32
    %c0_i32_0 = arith.constant 0 : i32
    %c0_i32_1 = arith.constant 0 : i32
    return %c0_i32, %c0_i32_0 : i32, i32
  }
  func.func @transform_8(%arg0: i32) -> (i32, i32) {
    %c0_i32 = arith.constant 0 : i32
    %c0_i32_0 = arith.constant 0 : i32
    %c0_i32_1 = arith.constant 0 : i32
    return %c0_i32, %c0_i32_0 : i32, i32
  }
  func.func @transform_9(%arg0: i32) -> (i32, i32) {
    %c0_i32 = arith.constant 0 : i32
    %c0_i32_0 = arith.constant 0 : i32
    %c0_i32_1 = arith.constant 0 : i32
    return %c0_i32, %c0_i32_0 : i32, i32
  }
  func.func @transform_10(%arg0: i32) -> (i32, i32, i32) {
    %c0_i32 = arith.constant 0 : i32
    %c0_i32_0 = arith.constant 0 : i32
    %c0_i32_1 = arith.constant 0 : i32
    return %arg0, %c0_i32, %c0_i32_0 : i32, i32, i32
  }
}

</mosaic_0001>

<llo_original>
// kernel: tpu_custom_call.1
$region0: #{tpu_custom_call.1}
  #allocation0 [shape = 'u32[]', space=smem, size = 0x4, offset = 0x4, fixed_abs, tag = 'smem constant byte address 0x4 - core index']
  #allocation1 [shape = 'u32[72,128]{1,0:T(1,128)}', space=vmem, size = 0x9000, scoped, tag = 'internal scratch']
  #allocation2 [shape = 'f32[1,1]{1,0:T(1,128)S(1)}', space=vmem, size = 0x200, scoped, tag = 'scoped memory for tpu_custom_call.1']
  %s0 = inlined_call_operand.vmem [shape: f32[2,4,256], index: 0, kind: input, shape index: {}]
  %s1 = inlined_call_operand.vmem [shape: f32[2,3,2], index: 1, kind: input, shape index: {}]
  %s2 = inlined_call_operand.hbm [shape: f32[9,256], index: 2, kind: input, shape index: {}]
  %s3 = inlined_call_operand.hbm [shape: f32[2,256], index: 3, kind: input, shape index: {}]
  %s4 = inlined_call_operand.vmem [shape: f32[8,36], index: 4, kind: input, shape index: {}]
  %s5 = inlined_call_operand.vmem [shape: f32[8,1], index: 5, kind: input, shape index: {}]
  %s6 = inlined_call_operand.vmem [shape: f32[8,72], index: 6, kind: input, shape index: {}]
  %s7 = inlined_call_operand.vmem [shape: f32[8,1], index: 7, kind: input, shape index: {}]
  %s8 = inlined_call_operand.vmem [shape: f32[1,8], index: 8, kind: input, shape index: {}]
  %s9 = inlined_call_operand.<no memory space> [shape: f32[1,1], index: 9, kind: input, shape index: {}]
  %s10 = inlined_call_operand.hbm [shape: f32[2,1,256], index: 10, kind: output, shape index: {}]
  %s11 = sld [smem:[#allocation0]]
  $region81: #{tpu_custom_call.1} parent=0
    _
  %s13 = ssub.s32 1, %s11
  %s14 = scalar_select 0, %s13, %s11
  %v15 = vstv %s9
  %16 = vst [vmem:[#allocation2] sm:$0x1] %v15
  $region1: #{tpu_custom_call.1} parent=0
    #allocation3 [shape = 'u8[16384]{0}', space=vmem, size = 0x4000, scoped, tag = 'input window, operand 2, single buffered']
    #allocation4 [shape = 's32[2]{0}', space=sflag, size = 0x8, scoped, tag = 'scoped memory for tpu_custom_call.1']
    #allocation5 [shape = 's32[2]{0}', space=sflag, size = 0x8, scoped, tag = 'scoped memory for tpu_custom_call.1']
    #allocation6 [shape = 'u8[2048]{0}', space=vmem, size = 0x800, scoped, tag = 'input window, operand 3, single buffered']
    #allocation7 [shape = 's32[1]{0}', space=sflag, size = 0x4, scoped, tag = 'scoped memory for tpu_custom_call.1']
    #allocation8 [shape = 'u8[2048]{0}', space=vmem, size = 0x800, scoped, tag = 'output window, operand 0']
    %17 = vsyncpa [#allocation4], 0
    %18 = vsyncpa [#allocation7], 0
    %19 = vsyncpa [#allocation5], 0
    %s20 = scalar_lea.sflag [#allocation5], 1
    %21 = vsyncpa %s20, 0
    loop: start=0, step=1, limit=4
    $region2: #{tpu_custom_call.1} parent=1 // loop_pre_header
      _
    $region3: #{tpu_custom_call.1} parent=1 // loop_header
      %s23 = sphi 0, %s27
      %p24 = scmp.ge.s32.totalorder %s23, 4
      %s33 = sphi 0, %s35
      %s36 = sphi 0, %s33
      %s37 = sphi 0, %s36
      %s53 = sphi 0, %s37
      %s59 = sphi 0, %s61
      %s62 = sphi 0, %s59
      %s63 = sphi 0, %s62
      %s79 = sphi 0, %s63
      %s83 = sphi 0, %s83
      %s85 = sphi 0, %s83
      %s86 = sphi 0, %s85
      %s100 = sphi 0, %s86
      %s104 = sphi 0, %s104
      %s106 = sphi 0, %s104
      %s107 = sphi 0, %s106
      %s121 = sphi 0, %s107
      %s125 = sphi 0, %s125
      %s127 = sphi 0, %s125
      %s128 = sphi 0, %s127
      %s142 = sphi 0, %s128
      %s146 = sphi 0, %s146
      %s148 = sphi 0, %s146
      %s149 = sphi 0, %s148
      %s163 = sphi 0, %s149
      %s167 = sphi 0, %s167
      %s169 = sphi 0, %s167
      %s170 = sphi 0, %s169
      %s184 = sphi 0, %s170
      %s188 = sphi 0, %s188
      %s190 = sphi 0, %s188
      %s191 = sphi 0, %s190
      %s205 = sphi 0, %s191
      %s209 = sphi 0, %s209
      %s211 = sphi 0, %s209
      %s212 = sphi 0, %s211
      %s226 = sphi 0, %s212
      %s230 = sphi 0, %s230
      %s232 = sphi 0, %s230
      %s233 = sphi 0, %s232
      %s247 = sphi 0, %s233
      %s253 = sphi 0, %s255
      %s256 = sphi 0, %s253
      %s257 = sphi 0, %s256
      %s273 = sphi 0, %s257
    $region4: #{tpu_custom_call.1} parent=1 // loop_header_branch
      %26 = sbr.rel (%p24) target = $region8
    $region5: #{tpu_custom_call.1} parent=1 // loop_body
      %s28 = ssub.s32 %s23, 1
      %s29 = ssub.s32 %s23, 2
      %s30 = sadd.s32 %s23, 1
      %s31 = ssub.s32 %s23, %s30
      %p32 = scmp.eq.s32.totalorder %s31, 0
      %s34 = sadd.s32 %s33, 1
      %s35 = scalar_select %p32, %s33, %s34
      %p38 = pneg %p32
      %p39 = scmp.eq.s32.totalorder %s23, 1
      %p40 = por %p38, %p39
      %p41 = scmp.ne.s32.totalorder %s33, %s36
      %p42 = scmp.eq.s32.totalorder %s23, 0
      %p43 = por %p41, %p42
      %p44 = scmp.ne.s32.totalorder %s33, %s36
      %p45 = scmp.eq.s32.totalorder %s28, 1
      %p46 = por %p44, %p45
      %p47 = scmp.ne.s32.totalorder %s36, %s37
      %p48 = scmp.eq.s32.totalorder %s28, 0
      %p49 = por %p47, %p48
      %p50 = scmp.ne.s32.totalorder %s36, %s37
      %p51 = scmp.eq.s32.totalorder %s29, 1
      %p52 = por %p50, %p51
      %p54 = scmp.ne.s32.totalorder %s37, %s53
      %p55 = scmp.eq.s32.totalorder %s29, 0
      %p56 = por %p54, %p55
      %s57 = ssub.s32 %s23, %s30
      %p58 = scmp.eq.s32.totalorder %s57, 0
      %s60 = sadd.s32 %s59, 1
      %s61 = scalar_select %p58, %s59, %s60
      %p64 = pneg %p58
      %p65 = scmp.eq.s32.totalorder %s23, 1
      %p66 = por %p64, %p65
      %p67 = scmp.ne.s32.totalorder %s59, %s62
      %p68 = scmp.eq.s32.totalorder %s23, 0
      %p69 = por %p67, %p68
      %p70 = scmp.ne.s32.totalorder %s59, %s62
      %p71 = scmp.eq.s32.totalorder %s28, 1
      %p72 = por %p70, %p71
      %p73 = scmp.ne.s32.totalorder %s62, %s63
      %p74 = scmp.eq.s32.totalorder %s28, 0
      %p75 = por %p73, %p74
      %p76 = scmp.ne.s32.totalorder %s62, %s63
      %p77 = scmp.eq.s32.totalorder %s29, 1
      %p78 = por %p76, %p77
      %p80 = scmp.ne.s32.totalorder %s63, %s79
      %p81 = scmp.eq.s32.totalorder %s29, 0
      %p82 = por %p80, %p81
      %s84 = sadd.s32 %s83, 1
      %p87 = scmp.eq.s32.totalorder %s23, 1
      %p88 = scmp.ne.s32.totalorder %s83, %s85
      %p89 = scmp.eq.s32.totalorder %s23, 0
      %p90 = por %p88, %p89
      %p91 = scmp.ne.s32.totalorder %s83, %s85
      %p92 = scmp.eq.s32.totalorder %s28, 1
      %p93 = por %p91, %p92
      %p94 = scmp.ne.s32.totalorder %s85, %s86
      %p95 = scmp.eq.s32.totalorder %s28, 0
      %p96 = por %p94, %p95
      %p97 = scmp.ne.s32.totalorder %s85, %s86
      %p98 = scmp.eq.s32.totalorder %s29, 1
      %p99 = por %p97, %p98
      %p101 = scmp.ne.s32.totalorder %s86, %s100
      %p102 = scmp.eq.s32.totalorder %s29, 0
      %p103 = por %p101, %p102
      %s105 = sadd.s32 %s104, 1
      %p108 = scmp.eq.s32.totalorder %s23, 1
      %p109 = scmp.ne.s32.totalorder %s104, %s106
      %p110 = scmp.eq.s32.totalorder %s23, 0
      %p111 = por %p109, %p110
      %p112 = scmp.ne.s32.totalorder %s104, %s106
      %p113 = scmp.eq.s32.totalorder %s28, 1
      %p114 = por %p112, %p113
      %p115 = scmp.ne.s32.totalorder %s106, %s107
      %p116 = scmp.eq.s32.totalorder %s28, 0
      %p117 = por %p115, %p116
      %p118 = scmp.ne.s32.totalorder %s106, %s107
      %p119 = scmp.eq.s32.totalorder %s29, 1
      %p120 = por %p118, %p119
      %p122 = scmp.ne.s32.totalorder %s107, %s121
      %p123 = scmp.eq.s32.totalorder %s29, 0
      %p124 = por %p122, %p123
      %s126 = sadd.s32 %s125, 1
      %p129 = scmp.eq.s32.totalorder %s23, 1
      %p130 = scmp.ne.s32.totalorder %s125, %s127
      %p131 = scmp.eq.s32.totalorder %s23, 0
      %p132 = por %p130, %p131
      %p133 = scmp.ne.s32.totalorder %s125, %s127
      %p134 = scmp.eq.s32.totalorder %s28, 1
      %p135 = por %p133, %p134
      %p136 = scmp.ne.s32.totalorder %s127, %s128
      %p137 = scmp.eq.s32.totalorder %s28, 0
      %p138 = por %p136, %p137
      %p139 = scmp.ne.s32.totalorder %s127, %s128
      %p140 = scmp.eq.s32.totalorder %s29, 1
      %p141 = por %p139, %p140
      %p143 = scmp.ne.s32.totalorder %s128, %s142
      %p144 = scmp.eq.s32.totalorder %s29, 0
      %p145 = por %p143, %p144
      %s147 = sadd.s32 %s146, 1
      %p150 = scmp.eq.s32.totalorder %s23, 1
      %p151 = scmp.ne.s32.totalorder %s146, %s148
      %p152 = scmp.eq.s32.totalorder %s23, 0
      %p153 = por %p151, %p152
      %p154 = scmp.ne.s32.totalorder %s146, %s148
      %p155 = scmp.eq.s32.totalorder %s28, 1
      %p156 = por %p154, %p155
      %p157 = scmp.ne.s32.totalorder %s148, %s149
      %p158 = scmp.eq.s32.totalorder %s28, 0
      %p159 = por %p157, %p158
      %p160 = scmp.ne.s32.totalorder %s148, %s149
      %p161 = scmp.eq.s32.totalorder %s29, 1
      %p162 = por %p160, %p161
      %p164 = scmp.ne.s32.totalorder %s149, %s163
      %p165 = scmp.eq.s32.totalorder %s29, 0
      %p166 = por %p164, %p165
      %s168 = sadd.s32 %s167, 1
      %p171 = scmp.eq.s32.totalorder %s23, 1
      %p172 = scmp.ne.s32.totalorder %s167, %s169
      %p173 = scmp.eq.s32.totalorder %s23, 0
      %p174 = por %p172, %p173
      %p175 = scmp.ne.s32.totalorder %s167, %s169
      %p176 = scmp.eq.s32.totalorder %s28, 1
      %p177 = por %p175, %p176
      %p178 = scmp.ne.s32.totalorder %s169, %s170
      %p179 = scmp.eq.s32.totalorder %s28, 0
      %p180 = por %p178, %p179
      %p181 = scmp.ne.s32.totalorder %s169, %s170
      %p182 = scmp.eq.s32.totalorder %s29, 1
      %p183 = por %p181, %p182
      %p185 = scmp.ne.s32.totalorder %s170, %s184
      %p186 = scmp.eq.s32.totalorder %s29, 0
      %p187 = por %p185, %p186
      %s189 = sadd.s32 %s188, 1
      %p192 = scmp.eq.s32.totalorder %s23, 1
      %p193 = scmp.ne.s32.totalorder %s188, %s190
      %p194 = scmp.eq.s32.totalorder %s23, 0
      %p195 = por %p193, %p194
      %p196 = scmp.ne.s32.totalorder %s188, %s190
      %p197 = scmp.eq.s32.totalorder %s28, 1
      %p198 = por %p196, %p197
      %p199 = scmp.ne.s32.totalorder %s190, %s191
      %p200 = scmp.eq.s32.totalorder %s28, 0
      %p201 = por %p199, %p200
      %p202 = scmp.ne.s32.totalorder %s190, %s191
      %p203 = scmp.eq.s32.totalorder %s29, 1
      %p204 = por %p202, %p203
      %p206 = scmp.ne.s32.totalorder %s191, %s205
      %p207 = scmp.eq.s32.totalorder %s29, 0
      %p208 = por %p206, %p207
      %s210 = sadd.s32 %s209, 1
      %p213 = scmp.eq.s32.totalorder %s23, 1
      %p214 = scmp.ne.s32.totalorder %s209, %s211
      %p215 = scmp.eq.s32.totalorder %s23, 0
      %p216 = por %p214, %p215
      %p217 = scmp.ne.s32.totalorder %s209, %s211
      %p218 = scmp.eq.s32.totalorder %s28, 1
      %p219 = por %p217, %p218
      %p220 = scmp.ne.s32.totalorder %s211, %s212
      %p221 = scmp.eq.s32.totalorder %s28, 0
      %p222 = por %p220, %p221
      %p223 = scmp.ne.s32.totalorder %s211, %s212
      %p224 = scmp.eq.s32.totalorder %s29, 1
      %p225 = por %p223, %p224
      %p227 = scmp.ne.s32.totalorder %s212, %s226
      %p228 = scmp.eq.s32.totalorder %s29, 0
      %p229 = por %p227, %p228
      %s231 = sadd.s32 %s230, 1
      %p234 = scmp.eq.s32.totalorder %s23, 1
      %p235 = scmp.ne.s32.totalorder %s230, %s232
      %p236 = scmp.eq.s32.totalorder %s23, 0
      %p237 = por %p235, %p236
      %p238 = scmp.ne.s32.totalorder %s230, %s232
      %p239 = scmp.eq.s32.totalorder %s28, 1
      %p240 = por %p238, %p239
      %p241 = scmp.ne.s32.totalorder %s232, %s233
      %p242 = scmp.eq.s32.totalorder %s28, 0
      %p243 = por %p241, %p242
      %p244 = scmp.ne.s32.totalorder %s232, %s233
      %p245 = scmp.eq.s32.totalorder %s29, 1
      %p246 = por %p244, %p245
      %p248 = scmp.ne.s32.totalorder %s233, %s247
      %p249 = scmp.eq.s32.totalorder %s29, 0
      %p250 = por %p248, %p249
      %s251 = ssub.s32 %s23, %s30
      %p252 = scmp.eq.s32.totalorder %s251, 0
      %s254 = sadd.s32 %s253, 1
      %s255 = scalar_select %p252, %s253, %s254
      %p258 = pneg %p252
      %p259 = scmp.eq.s32.totalorder %s23, 1
      %p260 = por %p258, %p259
      %p261 = scmp.ne.s32.totalorder %s253, %s256
      %p262 = scmp.eq.s32.totalorder %s23, 0
      %p263 = por %p261, %p262
      %p264 = scmp.ne.s32.totalorder %s253, %s256
      %p265 = scmp.eq.s32.totalorder %s28, 1
      %p266 = por %p264, %p265
      %p267 = scmp.ne.s32.totalorder %s256, %s257
      %p268 = scmp.eq.s32.totalorder %s28, 0
      %p269 = por %p267, %p268
      %p270 = scmp.ne.s32.totalorder %s256, %s257
      %p271 = scmp.eq.s32.totalorder %s29, 1
      %p272 = por %p270, %p271
      %p274 = scmp.ne.s32.totalorder %s257, %s273
      %p275 = scmp.eq.s32.totalorder %s29, 0
      %p276 = por %p274, %p275
      %p277 = scmp.le.s32.totalorder 1, %s23
      %p278 = scmp.lt.s32.totalorder %s23, 3
      %p279 = pnand %p277, %p278
      %p280 = pneg %p279
      // Predicated region
      $region9: #{tpu_custom_call.1} parent=5 // pred_check
        _
      $region10: #{tpu_custom_call.1} parent=5 // pred_check_branch
        %282 = sbr.rel (%p279) target = $region12
      $region11: #{tpu_custom_call.1} parent=5 // pred_region
        %s283 = ssub.s32 %s23, 1
        // Predicated region
        $region13: #{tpu_custom_call.1} parent=11 // pred_check
          %p284 = pneg %p96
        $region14: #{tpu_custom_call.1} parent=11 // pred_check_branch
          %286 = sbr.rel (%p284) target = $region16
        $region15: #{tpu_custom_call.1} parent=11 // pred_region
          %288 = vsyncadd [#allocation4], 0
          %s289 = sshll.u32 %s2, 4
          %s290 = int_to_ptr.hbm [resolvable:$true] %s289
          %s291 = sshll.u32 [#allocation3], 4
          %s292 = int_to_ptr.vmem [resolvable:$true] %s291
          %297 = dma.hbm_to_vmem [thread:$0]  %s290, 512, %s292, [#allocation4], 256, 256, 16
        $region16: #{tpu_custom_call.1} parent=11 // pred_fallthru
          _
        // Predicated region
        $region17: #{tpu_custom_call.1} parent=11 // pred_check
          %p298 = pneg %p117
        $region18: #{tpu_custom_call.1} parent=11 // pred_check_branch
          %300 = sbr.rel (%p298) target = $region20
        $region19: #{tpu_custom_call.1} parent=11 // pred_region
          %302 = vsyncadd [#allocation7], 0
          %s304 = sshll.u32 %s3, 4
          %s305 = int_to_ptr.hbm [resolvable:$true] %s304
          %s306 = sshll.u32 [#allocation6], 4
          %s307 = int_to_ptr.vmem [resolvable:$true] %s306
          %309 = dma.hbm_to_vmem [thread:$0]  %s305, 64, %s307, [#allocation7]
        $region20: #{tpu_custom_call.1} parent=11 // pred_fallthru
          _
        // Predicated region
        $region21: #{tpu_custom_call.1} parent=11 // pred_check
          %p310 = pneg %p138
        $region22: #{tpu_custom_call.1} parent=11 // pred_check_branch
          %312 = sbr.rel (%p310) target = $region24
        $region23: #{tpu_custom_call.1} parent=11 // pred_region
          _
        $region24: #{tpu_custom_call.1} parent=11 // pred_fallthru
          _
        // Predicated region
        $region25: #{tpu_custom_call.1} parent=11 // pred_check
          %p313 = pneg %p159
        $region26: #{tpu_custom_call.1} parent=11 // pred_check_branch
          %315 = sbr.rel (%p313) target = $region28
        $region27: #{tpu_custom_call.1} parent=11 // pred_region
          _
        $region28: #{tpu_custom_call.1} parent=11 // pred_fallthru
          _
        // Predicated region
        $region29: #{tpu_custom_call.1} parent=11 // pred_check
          %p316 = pneg %p180
        $region30: #{tpu_custom_call.1} parent=11 // pred_check_branch
          %318 = sbr.rel (%p316) target = $region32
        $region31: #{tpu_custom_call.1} parent=11 // pred_region
          _
        $region32: #{tpu_custom_call.1} parent=11 // pred_fallthru
          _
        // Predicated region
        $region33: #{tpu_custom_call.1} parent=11 // pred_check
          %p319 = pneg %p201
        $region34: #{tpu_custom_call.1} parent=11 // pred_check_branch
          %321 = sbr.rel (%p319) target = $region36
        $region35: #{tpu_custom_call.1} parent=11 // pred_region
          _
        $region36: #{tpu_custom_call.1} parent=11 // pred_fallthru
          _
        // Predicated region
        $region37: #{tpu_custom_call.1} parent=11 // pred_check
          %p322 = pneg %p222
        $region38: #{tpu_custom_call.1} parent=11 // pred_check_branch
          %324 = sbr.rel (%p322) target = $region40
        $region39: #{tpu_custom_call.1} parent=11 // pred_region
          _
        $region40: #{tpu_custom_call.1} parent=11 // pred_fallthru
          _
        // Predicated region
        $region41: #{tpu_custom_call.1} parent=11 // pred_check
          %p325 = pneg %p243
        $region42: #{tpu_custom_call.1} parent=11 // pred_check_branch
          %327 = sbr.rel (%p325) target = $region44
        $region43: #{tpu_custom_call.1} parent=11 // pred_region
          _
        $region44: #{tpu_custom_call.1} parent=11 // pred_fallthru
          _
      $region12: #{tpu_custom_call.1} parent=5 // pred_fallthru
        _
      %p328 = scmp.lt.s32.totalorder %s23, 2
      // Predicated region
      $region45: #{tpu_custom_call.1} parent=5 // pred_check
        %p329 = pneg %p328
      $region46: #{tpu_custom_call.1} parent=5 // pred_check_branch
        %331 = sbr.rel (%p329) target = $region48
      $region47: #{tpu_custom_call.1} parent=5 // pred_region
        // Predicated region
        $region49: #{tpu_custom_call.1} parent=47 // pred_check
          %p332 = pneg %p43
        $region50: #{tpu_custom_call.1} parent=47 // pred_check_branch
          %334 = sbr.rel (%p332) target = $region52
        $region51: #{tpu_custom_call.1} parent=47 // pred_region
          %p335 = scmp.lt.s32.totalorder %s23, 1
          %s336 = scalar_select %p335, %s23, 1
          %s337 = smul.addr %s336, 2
          %s338 = smul.addr %s337, 4
          %s339 = scalar_lea.vmem %s0, %s338
        $region52: #{tpu_custom_call.1} parent=47 // pred_fallthru
          _
        // Predicated region
        $region53: #{tpu_custom_call.1} parent=47 // pred_check
          %p340 = pneg %p69
        $region54: #{tpu_custom_call.1} parent=47 // pred_check_branch
          %342 = sbr.rel (%p340) target = $region56
        $region55: #{tpu_custom_call.1} parent=47 // pred_region
          %p343 = scmp.lt.s32.totalorder %s23, 1
          %s344 = scalar_select %p343, %s23, 1
          %s345 = smul.addr %s344, 4
          %s346 = scalar_lea.vmem %s1, %s345
        $region56: #{tpu_custom_call.1} parent=47 // pred_fallthru
          _
      $region48: #{tpu_custom_call.1} parent=5 // pred_fallthru
        _
      %p347 = scmp.le.s32.totalorder 1, %s23
      %p348 = scmp.lt.s32.totalorder %s23, 3
      %p349 = pnand %p347, %p348
      %p350 = pneg %p349
      // Predicated region
      $region57: #{tpu_custom_call.1} parent=5 // pred_check
        _
      $region58: #{tpu_custom_call.1} parent=5 // pred_check_branch
        %352 = sbr.rel (%p349) target = $region60
      $region59: #{tpu_custom_call.1} parent=5 // pred_region
        %s353 = ssub.s32 %s23, 1
        // Predicated region
        $region61: #{tpu_custom_call.1} parent=59 // pred_check
          %p354 = pneg %p96
        $region62: #{tpu_custom_call.1} parent=59 // pred_check_branch
          %356 = sbr.rel (%p354) target = $region64
        $region63: #{tpu_custom_call.1} parent=59 // pred_region
          %358 = dma.done [#allocation4], 512
        $region64: #{tpu_custom_call.1} parent=59 // pred_fallthru
          _
        // Predicated region
        $region65: #{tpu_custom_call.1} parent=59 // pred_check
          %p359 = pneg %p117
        $region66: #{tpu_custom_call.1} parent=59 // pred_check_branch
          %361 = sbr.rel (%p359) target = $region68
        $region67: #{tpu_custom_call.1} parent=59 // pred_region
          %363 = dma.done [#allocation7], 64
        $region68: #{tpu_custom_call.1} parent=59 // pred_fallthru
          _
        %p364 = scmp.lt.s32.totalorder %s28, 1
        %s365 = scalar_select %p364, %s28, 1
        %s366 = smul.addr %s365, 2
        %s367 = smul.addr %s366, 4
        %s368 = scalar_lea.vmem %s0, %s367
        %p369 = pneg %p49
        %p370 = pneg %p46
        %p371 = scmp.lt.s32.totalorder %s28, 1
        %s372 = scalar_select %p371, %s28, 1
        %s373 = smul.addr %s372, 4
        %s374 = scalar_lea.vmem %s1, %s373
        %p375 = pneg %p75
        %p376 = pneg %p72
        %p377 = pneg %p96
        %p378 = pneg %p93
        %p379 = pneg %p117
        %p380 = pneg %p114
        %p381 = pneg %p138
        %p382 = pneg %p135
        %p383 = pneg %p159
        %p384 = pneg %p156
        %p385 = pneg %p180
        %p386 = pneg %p177
        %p387 = pneg %p201
        %p388 = pneg %p198
        %p389 = pneg %p222
        %p390 = pneg %p219
        %p391 = pneg %p243
        %p392 = pneg %p240
        %p393 = pneg %p269
        %p394 = pneg %p266
        %s395 = sand.u32 %s256, 1
        %s396 = scalar_lea.sflag [#allocation5], %s395
        %s397 = sand.u32 %s256, 1
        %s398 = smul.addr %s397, 2
        %s399 = scalar_lea.vmem [#allocation8], %s398
        %p400 = scmp.lt.s32.totalorder %s28, 1
        %s401 = scalar_select %p400, %s28, 1
        %s402 = smul.addr %s401, 2
        %s403 = smul.addr %s402, 4
        %s404 = scalar_lea.vmem %s0, %s403
        %p405 = scmp.lt.s32.totalorder %s28, 1
        %s406 = scalar_select %p405, %s28, 1
        %s407 = smul.addr %s406, 4
        %s408 = scalar_lea.vmem %s1, %s407
        %v409 = vld [vmem:[#allocation3] sm:$0xff]
        %v410 = vld [vmem:[#allocation3 + $0x8] sm:$0xff]
        %v411 = vld [vmem:[#allocation3 + $0x10] sm:$0x1]
        %v412 = vld [vmem:[#allocation3 + $0x18] sm:$0x1]
        %v413 = vld [vmem:[%s404] sm:$0xff]
        %v414 = vld [vmem:[%s4] sm:$0xff]
        %v415 = vld [vmem:[%s5] sm:$0xff]
        %417 = vst [vmem:[#allocation1] ss:$2 sm:$0xff] %v413
        %v418 = vld.sshfl [vmem:[#allocation1] sm:$0xff pattern:$0x75316420]
        %v419 = vld.sshfl [vmem:[#allocation1 + $0x8] sm:$0xff pattern:$0x75316420]
        %422 = vrot.lane.b32.xlu0 %v418, 17
        %v423 = vpop.permute.xlu0 %422
        %424 = vrot.lane.b32.xlu0 %v419, 17
        %v425 = vpop.permute.xlu0 %424
        %v426 = vlaneseq
        %v427 = vand.u32 %v426, 127
        %vm428 = vcmp.lt.s32.totalorder %v427, 17
        %v429 = vsel %vm428, %v423, %v425
        %v430 = vsel %vm428, %v425, %v423
        %v431 = vperm.slane %v409, 0
        %v432 = vperm.slane %v410, 0
        %v433 = vmul.f32 %v430, %v431
        %v434 = vmul.f32 %v429, %v432
        %435 = vst [vmem:[#allocation1] ss:$2 sm:$0xff] %v413
        %v436 = vld.sshfl [vmem:[#allocation1] sm:$0xff pattern:$0x75316420]
        %v437 = vld.sshfl [vmem:[#allocation1 + $0x8] sm:$0xff pattern:$0x75316420]
        %440 = vrot.lane.b32.xlu0 %v436, 16
        %v441 = vpop.permute.xlu0 %440
        %442 = vrot.lane.b32.xlu0 %v437, 16
        %v443 = vpop.permute.xlu0 %442
        %vm444 = vcmp.lt.s32.totalorder %v427, 16
        %v445 = vsel %vm444, %v441, %v443
        %v446 = vsel %vm444, %v443, %v441
        %v447 = vperm.slane %v409, 1
        %v448 = vperm.slane %v410, 1
        %v449 = vmul.f32 %v446, %v447
        %v450 = vmul.f32 %v445, %v448
        %451 = vst [vmem:[#allocation1] ss:$2 sm:$0xff] %v413
        %v452 = vld.sshfl [vmem:[#allocation1] sm:$0xff pattern:$0x75316420]
        %v453 = vld.sshfl [vmem:[#allocation1 + $0x8] sm:$0xff pattern:$0x75316420]
        %456 = vrot.lane.b32.xlu0 %v452, 15
        %v457 = vpop.permute.xlu0 %456
        %458 = vrot.lane.b32.xlu0 %v453, 15
        %v459 = vpop.permute.xlu0 %458
        %vm460 = vcmp.lt.s32.totalorder %v427, 15
        %v461 = vsel %vm460, %v457, %v459
        %v462 = vsel %vm460, %v459, %v457
        %v463 = vperm.slane %v409, 2
        %v464 = vperm.slane %v410, 2
        %v465 = vmul.f32 %v462, %v463
        %v466 = vmul.f32 %v461, %v464
        %467 = vst [vmem:[#allocation1] ss:$2 sm:$0xff] %v413
        %v468 = vld.sshfl [vmem:[#allocation1] sm:$0xff pattern:$0x75316420]
        %v469 = vld.sshfl [vmem:[#allocation1 + $0x8] sm:$0xff pattern:$0x75316420]
        %472 = vrot.lane.b32.xlu0 %v468, 1
        %v473 = vpop.permute.xlu0 %472
        %474 = vrot.lane.b32.xlu0 %v469, 1
        %v475 = vpop.permute.xlu0 %474
        %vm476 = vcmp.lt.s32.totalorder %v427, 1
        %v477 = vsel %vm476, %v473, %v475
        %v478 = vsel %vm476, %v475, %v473
        %v479 = vperm.slane %v409, 3
        %v480 = vperm.slane %v410, 3
        %v481 = vmul.f32 %v478, %v479
        %v482 = vmul.f32 %v477, %v480
        %v483 = vperm.slane %v409, 4
        %v484 = vperm.slane %v410, 4
        %v487 = vrot.slane %v484, 4
        %vm488 = vcmask 1043456
        %v489 = vsel %vm488, %v483, %v487
        %v491 = vmul.f32 %v413, %v489
        %492 = vst [vmem:[#allocation1] ss:$2 sm:$0xff] %v413
        %v493 = vld.sshfl [vmem:[#allocation1] sm:$0xff pattern:$0x75316420]
        %v494 = vld.sshfl [vmem:[#allocation1 + $0x8] sm:$0xff pattern:$0x75316420]
        %497 = vrot.lane.b32.xlu0 %v493, 127
        %v498 = vpop.permute.xlu0 %497
        %499 = vrot.lane.b32.xlu0 %v494, 127
        %v500 = vpop.permute.xlu0 %499
        %vm501 = vcmp.lt.s32.totalorder %v427, 127
        %v502 = vsel %vm501, %v498, %v500
        %v503 = vsel %vm501, %v500, %v498
        %v504 = vperm.slane %v409, 5
        %v505 = vperm.slane %v410, 5
        %v506 = vmul.f32 %v502, %v504
        %v507 = vmul.f32 %v503, %v505
        %508 = vst [vmem:[#allocation1] ss:$2 sm:$0xff] %v413
        %v509 = vld.sshfl [vmem:[#allocation1] sm:$0xff pattern:$0x75316420]
        %v510 = vld.sshfl [vmem:[#allocation1 + $0x8] sm:$0xff pattern:$0x75316420]
        %513 = vrot.lane.b32.xlu0 %v509, 113
        %v514 = vpop.permute.xlu0 %513
        %515 = vrot.lane.b32.xlu0 %v510, 113
        %v516 = vpop.permute.xlu0 %515
        %vm517 = vcmp.lt.s32.totalorder %v427, 113
        %v518 = vsel %vm517, %v514, %v516
        %v519 = vsel %vm517, %v516, %v514
        %v520 = vperm.slane %v409, 6
        %v521 = vperm.slane %v410, 6
        %v522 = vmul.f32 %v518, %v520
        %v523 = vmul.f32 %v519, %v521
        %524 = vst [vmem:[#allocation1] ss:$2 sm:$0xff] %v413
        %v525 = vld.sshfl [vmem:[#allocation1] sm:$0xff pattern:$0x75316420]
        %v526 = vld.sshfl [vmem:[#allocation1 + $0x8] sm:$0xff pattern:$0x75316420]
        %529 = vrot.lane.b32.xlu0 %v525, 112
        %v530 = vpop.permute.xlu0 %529
        %531 = vrot.lane.b32.xlu0 %v526, 112
        %v532 = vpop.permute.xlu0 %531
        %vm533 = vcmp.lt.s32.totalorder %v427, 112
        %v534 = vsel %vm533, %v530, %v532
        %v535 = vsel %vm533, %v532, %v530
        %v536 = vperm.slane %v409, 7
        %v537 = vperm.slane %v410, 7
        %v538 = vmul.f32 %v534, %v536
        %v539 = vmul.f32 %v535, %v537
        %540 = vst [vmem:[#allocation1] ss:$2 sm:$0xff] %v413
        %v541 = vld.sshfl [vmem:[#allocation1] sm:$0xff pattern:$0x75316420]
        %v542 = vld.sshfl [vmem:[#allocation1 + $0x8] sm:$0xff pattern:$0x75316420]
        %545 = vrot.lane.b32.xlu0 %v541, 111
        %v546 = vpop.permute.xlu0 %545
        %547 = vrot.lane.b32.xlu0 %v542, 111
        %v548 = vpop.permute.xlu0 %547
        %vm549 = vcmp.lt.s32.totalorder %v427, 111
        %v550 = vsel %vm549, %v546, %v548
        %v551 = vsel %vm549, %v548, %v546
        %v552 = vperm.slane %v411, 0
        %v553 = vperm.slane %v412, 0
        %v554 = vmul.f32 %v550, %v552
        %v555 = vmul.f32 %v551, %v553
        %v558 = vrot.slane %v449, 4
        %v559 = vrot.slane %v450, 4
        %v564 = vrot.slane %v481, 4
        %v565 = vrot.slane %v482, 4
        %569 = vst [vmem:[#allocation1] ss:$2 sm:$0xff] %v491
        %v570 = vld.sshfl [vmem:[#allocation1] sm:$0xff pattern:$0x75316420]
        %v571 = vld.sshfl [vmem:[#allocation1 + $0x8] sm:$0xff pattern:$0x75316420]
        %v576 = vrot.slane %v506, 4
        %v577 = vrot.slane %v507, 4
        %v582 = vrot.slane %v538, 4
        %v583 = vrot.slane %v539, 4
        %v586 = vsel %vm488, %v433, %v558
        %v587 = vsel %vm488, %v434, %v559
        %v588 = vsel %vm488, %v465, %v564
        %v589 = vsel %vm488, %v466, %v565
        %v590 = vsel %vm488, %v570, %v576
        %v591 = vsel %vm488, %v571, %v577
        %v592 = vsel %vm488, %v522, %v582
        %v593 = vsel %vm488, %v523, %v583
        %595 = vset.pattern.permute.xlu0 0
        %596 = vperm.xlu0 %595, %v415
        %v597 = vpop.permute.xlu0 %596
        %vm599 = vcmask 293888
        %v601 = vsel %vm599, %v414, 0
        %v604 = vsel %vm488, %v554, 0
        %v607 = vsel %vm488, %v555, 0
        %609 = vmatpush.msra.mxu0 0.0
        %610 = vmatpush.msra.mxu0 0.0
        %611 = vmatpush.msra.mxu0 0.0
        %612 = vmatpush.msra.mxu0 0.0
        %613 = vmatpush.msra.mxu0 0.0
        %614 = vmatpush.msra.mxu0 0.0
        %615 = vmatpush.msra.mxu0 0.0
        %616 = vmatpush.msra.mxu0 0.0
        %617 = vmatpush.msra.mxu0 0.0
        %618 = vmatpush.msra.mxu0 0.0
        %619 = vmatpush.msra.mxu0 0.0
        %620 = vmatpush.msra.mxu0 %v604
        %621 = vmatpush.msra.mxu0 %v592
        %622 = vmatpush.msra.mxu0 %v590
        %623 = vmatpush.msra.mxu0 %v588
        %624 = vmatpush.msra.mxu0 %v586
        %625 = vmatmul.f32.gmra.mxu0 %v601
        %v626 = vpop.f32.mrf.mxu0
        %v627 = vadd.f32 %v597, %v626
        %628 = vdwg.mxu0
        %629 = vmatpush.msra.mxu0 0.0
        %630 = vmatpush.msra.mxu0 0.0
        %631 = vmatpush.msra.mxu0 0.0
        %632 = vmatpush.msra.mxu0 0.0
        %633 = vmatpush.msra.mxu0 0.0
        %634 = vmatpush.msra.mxu0 0.0
        %635 = vmatpush.msra.mxu0 0.0
        %636 = vmatpush.msra.mxu0 0.0
        %637 = vmatpush.msra.mxu0 0.0
        %638 = vmatpush.msra.mxu0 0.0
        %639 = vmatpush.msra.mxu0 0.0
        %640 = vmatpush.msra.mxu0 %v607
        %641 = vmatpush.msra.mxu0 %v593
        %642 = vmatpush.msra.mxu0 %v591
        %643 = vmatpush.msra.mxu0 %v589
        %644 = vmatpush.msra.mxu0 %v587
        %645 = vmatmul.f32.gmra.mxu0 %v601
        %v646 = vpop.f32.mrf.mxu0
        %v647 = vadd.f32 %v597, %v646
        %648 = vdwg.mxu0
        %v649 = vmax.f32 %v627, 0.0
        %v650 = vmax.f32 %v647, 0.0
        %v651 = vld [vmem:[%s6] sm:$0xff]
        %v652 = vld [vmem:[%s7] sm:$0xff]
        %653 = vrot.lane.b32.xlu0 %v649, 17
        %v654 = vpop.permute.xlu0 %653
        %655 = vrot.lane.b32.xlu0 %v650, 17
        %v656 = vpop.permute.xlu0 %655
        %v657 = vsel %vm428, %v654, %v656
        %v658 = vsel %vm428, %v656, %v654
        %v659 = vmul.f32 %v658, %v431
        %v660 = vmul.f32 %v657, %v432
        %661 = vrot.lane.b32.xlu0 %v649, 16
        %v662 = vpop.permute.xlu0 %661
        %663 = vrot.lane.b32.xlu0 %v650, 16
        %v664 = vpop.permute.xlu0 %663
        %v665 = vsel %vm444, %v662, %v664
        %v666 = vsel %vm444, %v664, %v662
        %v667 = vmul.f32 %v666, %v447
        %v668 = vmul.f32 %v665, %v448
        %669 = vrot.lane.b32.xlu0 %v649, 15
        %v670 = vpop.permute.xlu0 %669
        %671 = vrot.lane.b32.xlu0 %v650, 15
        %v672 = vpop.permute.xlu0 %671
        %v673 = vsel %vm460, %v670, %v672
        %v674 = vsel %vm460, %v672, %v670
        %v675 = vmul.f32 %v674, %v463
        %v676 = vmul.f32 %v673, %v464
        %677 = vrot.lane.b32.xlu0 %v649, 1
        %v678 = vpop.permute.xlu0 %677
        %679 = vrot.lane.b32.xlu0 %v650, 1
        %v680 = vpop.permute.xlu0 %679
        %v681 = vsel %vm476, %v678, %v680
        %v682 = vsel %vm476, %v680, %v678
        %v683 = vmul.f32 %v682, %v479
        %v684 = vmul.f32 %v681, %v480
        %v685 = vmul.f32 %v649, %v483
        %v686 = vmul.f32 %v650, %v484
        %687 = vrot.lane.b32.xlu0 %v649, 127
        %v688 = vpop.permute.xlu0 %687
        %689 = vrot.lane.b32.xlu0 %v650, 127
        %v690 = vpop.permute.xlu0 %689
        %v691 = vsel %vm501, %v688, %v690
        %v692 = vsel %vm501, %v690, %v688
        %v693 = vmul.f32 %v691, %v504
        %v694 = vmul.f32 %v692, %v505
        %695 = vrot.lane.b32.xlu0 %v649, 113
        %v696 = vpop.permute.xlu0 %695
        %697 = vrot.lane.b32.xlu0 %v650, 113
        %v698 = vpop.permute.xlu0 %697
        %v699 = vsel %vm517, %v696, %v698
        %v700 = vsel %vm517, %v698, %v696
        %v701 = vmul.f32 %v699, %v520
        %v702 = vmul.f32 %v700, %v521
        %703 = vrot.lane.b32.xlu0 %v649, 112
        %v704 = vpop.permute.xlu0 %703
        %705 = vrot.lane.b32.xlu0 %v650, 112
        %v706 = vpop.permute.xlu0 %705
        %v707 = vsel %vm533, %v704, %v706
        %v708 = vsel %vm533, %v706, %v704
        %v709 = vmul.f32 %v707, %v536
        %v710 = vmul.f32 %v708, %v537
        %711 = vrot.lane.b32.xlu0 %v649, 111
        %v712 = vpop.permute.xlu0 %711
        %713 = vrot.lane.b32.xlu0 %v650, 111
        %v714 = vpop.permute.xlu0 %713
        %v715 = vsel %vm549, %v712, %v714
        %v716 = vsel %vm549, %v714, %v712
        %v717 = vmul.f32 %v715, %v552
        %v718 = vmul.f32 %v716, %v553
        %720 = vset.pattern.permute.xlu0 0
        %721 = vperm.xlu0 %720, %v652
        %v722 = vpop.permute.xlu0 %721
        %vm724 = vcmask 588800
        %v726 = vsel %vm724, %v651, 0
        %728 = vmatpush.msra.mxu0 0.0
        %729 = vmatpush.msra.mxu0 0.0
        %730 = vmatpush.msra.mxu0 0.0
        %731 = vmatpush.msra.mxu0 0.0
        %732 = vmatpush.msra.mxu0 0.0
        %733 = vmatpush.msra.mxu0 0.0
        %734 = vmatpush.msra.mxu0 0.0
        %735 = vmatpush.msra.mxu0 %v717
        %736 = vmatpush.msra.mxu0 %v709
        %737 = vmatpush.msra.mxu0 %v701
        %738 = vmatpush.msra.mxu0 %v693
        %739 = vmatpush.msra.mxu0 %v685
        %740 = vmatpush.msra.mxu0 %v683
        %741 = vmatpush.msra.mxu0 %v675
        %742 = vmatpush.msra.mxu0 %v667
        %743 = vmatpush.msra.mxu0 %v659
        %744 = vmatmul.f32.gmra.mxu0 %v726
        %v745 = vpop.f32.mrf.mxu0
        %v746 = vadd.f32 %v722, %v745
        %747 = vdwg.mxu0
        %748 = vmatpush.msra.mxu0 0.0
        %749 = vmatpush.msra.mxu0 0.0
        %750 = vmatpush.msra.mxu0 0.0
        %751 = vmatpush.msra.mxu0 0.0
        %752 = vmatpush.msra.mxu0 0.0
        %753 = vmatpush.msra.mxu0 0.0
        %754 = vmatpush.msra.mxu0 0.0
        %755 = vmatpush.msra.mxu0 %v718
        %756 = vmatpush.msra.mxu0 %v710
        %757 = vmatpush.msra.mxu0 %v702
        %758 = vmatpush.msra.mxu0 %v694
        %759 = vmatpush.msra.mxu0 %v686
        %760 = vmatpush.msra.mxu0 %v684
        %761 = vmatpush.msra.mxu0 %v676
        %762 = vmatpush.msra.mxu0 %v668
        %763 = vmatpush.msra.mxu0 %v660
        %764 = vmatmul.f32.gmra.mxu0 %v726
        %v765 = vpop.f32.mrf.mxu0
        %v766 = vadd.f32 %v722, %v765
        %767 = vdwg.mxu0
        %v768 = vmax.f32 %v746, 0.0
        %v769 = vmax.f32 %v766, 0.0
        %v770 = vld [vmem:[%s408] sm:$0x7]
        %v771 = vld [vmem:[#allocation6] ss:$2 sm:$0x3]
        %s772 = scalar_lea.vmem [#allocation6], 1
        %v773 = vld [vmem:[%s772] ss:$2 sm:$0x3]
        %v775 = vperm.slane %v771, 0
        %v776 = vperm.slane %v771, 1
        %780 = vset.pattern.permute.xlu0 0
        %781 = vperm.xlu0 %780, %v770
        %v782 = vpop.permute.xlu0 %781
        %v784 = vsub.f32 %v775, %v782
        %v785 = vsub.f32 %v776, %v782
        %v786 = vmul.f32 %v784, %v784
        %v787 = vmul.f32 %v785, %v785
        %v789 = vperm.slane %v773, 0
        %v790 = vperm.slane %v773, 1
        %793 = vset.pattern.permute.xlu0 1
        %794 = vperm.xlu0 %793, %v770
        %v795 = vpop.permute.xlu0 %794
        %v797 = vsub.f32 %v789, %v795
        %v798 = vsub.f32 %v790, %v795
        %v799 = vmul.f32 %v797, %v797
        %v800 = vmul.f32 %v798, %v798
        %v801 = vadd.f32 %v786, %v799
        %v802 = vadd.f32 %v787, %v800
        %v803 = vsub.f32 0.0, %v801
        %v804 = vsub.f32 0.0, %v802
        %v805 = vmul.f32 %v803, 0.125
        %v806 = vmul.f32 %v804, 0.125
        %v807 = vmul.f32 %v805, 1.442695
        %v808 = vpow.pop %v807
        %v809 = vmul.f32 %v806, 1.442695
        %v810 = vpow.pop %v809
        %vm811 = vcmask 1042432
        %v812 = vsel %vm811, %v808, -inf
        %v813 = vrot.slane %v812, 4
        %v814 = vmax.f32 %v812, %v813
        %v815 = vrot.slane %v814, 2
        %v816 = vmax.f32 %v814, %v815
        %v817 = vrot.slane %v816, 1
        %v818 = vmax.f32 %v816, %v817
        %v819 = vsel %vm811, %v810, -inf
        %v820 = vrot.slane %v819, 4
        %v821 = vmax.f32 %v819, %v820
        %v822 = vrot.slane %v821, 2
        %v823 = vmax.f32 %v821, %v822
        %v824 = vrot.slane %v823, 1
        %v825 = vmax.f32 %v823, %v824
        %v826 = vadd.f32 %v768, %v818
        %v827 = vadd.f32 %v769, %v825
        %v828 = vld [vmem:[%s8] sm:$0x1]
        %v829 = vld [vmem:[#allocation2] sm:$0x1]
        %831 = vset.pattern.permute.xlu0 0
        %832 = vperm.xlu0 %831, %v829
        %v833 = vpop.permute.xlu0 %832
        %v835 = vperm.slane %v833, 0
        %vm836 = vcmask 64512
        %v838 = vsel %vm836, %v828, 0
        %840 = vmatpush.msra.mxu0 0.0
        %841 = vmatpush.msra.mxu0 0.0
        %842 = vmatpush.msra.mxu0 0.0
        %843 = vmatpush.msra.mxu0 0.0
        %844 = vmatpush.msra.mxu0 0.0
        %845 = vmatpush.msra.mxu0 0.0
        %846 = vmatpush.msra.mxu0 0.0
        %847 = vmatpush.msra.mxu0 0.0
        %848 = vmatpush.msra.mxu0 0.0
        %849 = vmatpush.msra.mxu0 0.0
        %850 = vmatpush.msra.mxu0 0.0
        %851 = vmatpush.msra.mxu0 0.0
        %852 = vmatpush.msra.mxu0 0.0
        %853 = vmatpush.msra.mxu0 0.0
        %854 = vmatpush.msra.mxu0 0.0
        %855 = vmatpush.msra.mxu0 %v826
        %856 = vmatmul.f32.gmra.mxu0 %v838
        %v857 = vpop.f32.mrf.mxu0
        %v858 = vadd.f32 %v835, %v857
        %859 = vdwg.mxu0
        %860 = vmatpush.msra.mxu0 0.0
        %861 = vmatpush.msra.mxu0 0.0
        %862 = vmatpush.msra.mxu0 0.0
        %863 = vmatpush.msra.mxu0 0.0
        %864 = vmatpush.msra.mxu0 0.0
        %865 = vmatpush.msra.mxu0 0.0
        %866 = vmatpush.msra.mxu0 0.0
        %867 = vmatpush.msra.mxu0 0.0
        %868 = vmatpush.msra.mxu0 0.0
        %869 = vmatpush.msra.mxu0 0.0
        %870 = vmatpush.msra.mxu0 0.0
        %871 = vmatpush.msra.mxu0 0.0
        %872 = vmatpush.msra.mxu0 0.0
        %873 = vmatpush.msra.mxu0 0.0
        %874 = vmatpush.msra.mxu0 0.0
        %875 = vmatpush.msra.mxu0 %v827
        %876 = vmatmul.f32.gmra.mxu0 %v838
        %v877 = vpop.f32.mrf.mxu0
        %v878 = vadd.f32 %v835, %v877
        %879 = vdwg.mxu0
        %v880 = vxor.u32 %v858, 2147483648
        %v881 = vxor.u32 %v878, 2147483648
        %v882 = vmul.f32 %v880, 1.442695
        %v883 = vpow.pop %v882
        %v884 = vmul.f32 %v881, 1.442695
        %v885 = vpow.pop %v884
        %v886 = vadd.f32 %v883, 1.0
        %v887 = vadd.f32 %v885, 1.0
        %v888 = vrcp.pop %v886
        %v889 = vmul.f32 %v886, %v888
        %v890 = vsub.f32 1.0, %v889
        %v891 = vmul.f32 %v888, %v890
        %v892 = vadd.f32 %v888, %v891
        %vm893 = vweird.f32 %v886
        %vm894 = vweird.f32 %v888
        %vm895 = vmor %vm893, %vm894
        %v896 = vsel %vm895, %v888, %v892
        %v897 = vand.u32 2147483647, %v886
        %vm898 = vcmp.eq.f32.partialorder %v897, 8.507059e+37
        %v899 = vand.u32 %v886, 2147483648
        %v900 = vor.u32 1.1754944e-38, %v899
        %v901 = vsel %vm898, %v900, %v896
        %v902 = vmul.f32 1.0, %v901
        %v903 = vrcp.pop %v887
        %v904 = vmul.f32 %v887, %v903
        %v905 = vsub.f32 1.0, %v904
        %v906 = vmul.f32 %v903, %v905
        %v907 = vadd.f32 %v903, %v906
        %vm908 = vweird.f32 %v887
        %vm909 = vweird.f32 %v903
        %vm910 = vmor %vm908, %vm909
        %v911 = vsel %vm910, %v903, %v907
        %v912 = vand.u32 2147483647, %v887
        %vm913 = vcmp.eq.f32.partialorder %v912, 8.507059e+37
        %v914 = vand.u32 %v887, 2147483648
        %v915 = vor.u32 1.1754944e-38, %v914
        %v916 = vsel %vm913, %v915, %v911
        %v917 = vmul.f32 1.0, %v916
        %v920 = vrot.slane %v917, 7
        %vm921 = vcmask 1040384
        %v922 = vsel %vm921, %v902, %v920
        %v924 = vlaneseq
        %vm925 = vcmp.ge.s32.totalorder %v924, 0
        %vm926 = vcmp.lt.s32.totalorder %v924, 256
        %vm927 = vmand %vm925, %vm926
        %928 = vst.msk [vmem:[%s399] sm:$0x3] %vm927, %v922
        %s929 = sand.u32 %s256, 1
        %s930 = scalar_lea.sflag [#allocation5], %s929
        %s931 = sand.u32 %s256, 1
        %s932 = smul.addr %s931, 2
        %s933 = scalar_lea.vmem [#allocation8], %s932
        // Predicated region
        $region69: #{tpu_custom_call.1} parent=59 // pred_check
          %p934 = pneg %p266
        $region70: #{tpu_custom_call.1} parent=59 // pred_check_branch
          %936 = sbr.rel (%p934) target = $region72
        $region71: #{tpu_custom_call.1} parent=59 // pred_region
          %938 = vsyncadd %s930, 0
          %s939 = smul.addr %s28, 2
          %s940 = scalar_lea.hbm %s10, %s939
          %s942 = sshll.u32 %s933, 4
          %s943 = int_to_ptr.vmem [resolvable:$true] %s942
          %s944 = sshll.u32 %s940, 4
          %s945 = int_to_ptr.hbm [resolvable:$true] %s944
          %947 = dma.vmem_to_hbm [thread:$0]  %s943, 32, %s945, %s930
        $region72: #{tpu_custom_call.1} parent=59 // pred_fallthru
          _
      $region60: #{tpu_custom_call.1} parent=5 // pred_fallthru
        _
      %p948 = scmp.le.s32.totalorder 2, %s23
      // Predicated region
      $region73: #{tpu_custom_call.1} parent=5 // pred_check
        %p949 = pneg %p948
      $region74: #{tpu_custom_call.1} parent=5 // pred_check_branch
        %951 = sbr.rel (%p949) target = $region76
      $region75: #{tpu_custom_call.1} parent=5 // pred_region
        %s952 = ssub.s32 %s23, 2
        // Predicated region
        $region77: #{tpu_custom_call.1} parent=75 // pred_check
          %p953 = pneg %p272
        $region78: #{tpu_custom_call.1} parent=75 // pred_check_branch
          %955 = sbr.rel (%p953) target = $region80
        $region79: #{tpu_custom_call.1} parent=75 // pred_region
          %s956 = sand.u32 %s257, 1
          %s957 = scalar_lea.sflag [#allocation5], %s956
          %s958 = sand.u32 %s257, 1
          %s959 = smul.addr %s958, 2
          %s960 = scalar_lea.vmem [#allocation8], %s959
          %962 = dma.done %s957, 32
        $region80: #{tpu_custom_call.1} parent=75 // pred_fallthru
          _
      $region76: #{tpu_custom_call.1} parent=5 // pred_fallthru
        _
    $region6: #{tpu_custom_call.1} parent=1 // loop_footer
      %s27 = sadd.s32 1, %s23
    $region7: #{tpu_custom_call.1} parent=1 // loop_footer_branch
      %22 = sbr.rel target = $region3
    $region8: #{tpu_custom_call.1} parent=1 // loop_exit
      _
    %963 = vsyncpa [#allocation4], 1
    %s964 = scalar_lea.sflag [#allocation4], 1
    %965 = vsyncpa %s964, 1
    %966 = vsyncpa [#allocation7], 1
    %967 = vsyncpa [#allocation5], 1
    %s968 = scalar_lea.sflag [#allocation5], 1
    %969 = vsyncpa %s968, 1

</llo_original>
